<compile_context>
chip_gen: v5e
topology: v5e:2x2
jax: 0.10.0
libtpu: 0.0.40
codegen_flags: <defaults>
</compile_context>

<pallas_src>
import math

import jax
import jax.numpy as jnp
from jax.experimental import pallas as pl
from jax.experimental.pallas import tpu as pltpu


def attention_kernel(x_ref, wblk_ref, b_ref, e_ref, p_ref, o_ref):
    """One grid step handles TB batch rows on the lane-dense 2-D view.

    x_ref    : (TB, S*F)  input rows, (step, feature) flattened -> lane-dense
    wblk_ref : (S*F, S)   block-diagonal copies of the (F, 1) projection weight
    b_ref    : (1, S)     per-step bias row
    e_ref    : (S, S*F)   step -> (step*F) segment indicator (0/1)
    p_ref    : (S*F, F)   (step*F) -> feature segment-sum matrix (0/1)
    o_ref    : (TB, F)    output rows
    """
    x = x_ref[...]                                              # (TB, S*F) f32

    # eij[b, s] = sum_f x[b, s, f] * w[f] + b[s]   -- MXU, not an XLU F-reduce.
    eij = jnp.dot(x, wblk_ref[...],
                  preferred_element_type=jnp.float32) + b_ref[...]   # (TB, S)
    eij = jnp.tanh(eij)
    a = jnp.exp(eij)                                            # (TB, S)

    # Normalize over the step axis, then add 1e-10 (same op order as torch).
    # Exact divide: it touches only TB*S scalars and is not the binding slot.
    a = a / jnp.sum(a, axis=-1, keepdims=True) + 1e-10          # (TB, S)

    # Broadcast a over the F lanes of each step segment via the MXU
    # (instead of an XLU lane-broadcast): (TB, S) @ (S, S*F) -> (TB, S*F)
    a_exp = jnp.dot(a, e_ref[...], preferred_element_type=jnp.float32)

    # Weighted sum over steps as a segment-sum matmul: (TB, S*F) @ (S*F, F)
    out = jnp.dot(x * a_exp, p_ref[...], preferred_element_type=jnp.float32)

    # TODO(synk): lane-dense (TB*F//128, 128) output slab skipped -- output is
    # ~1/8 of the traffic and the in-kernel reshape may force a relayout.
    o_ref[...] = out.astype(o_ref.dtype)


def attention_forward(x, weight, bias, tile_b=2048):
    """x: (B, S, F) f32, weight: (F, 1) f32, bias: (S,) f32 -> (B, F) f32."""
    B, S, F = x.shape
    SF = S * F

    # Lane-dense 2-D view of the input (free reshape, no copy).
    x2d = x.reshape(B, SF)

    # Constant matrices for the MXU contractions (computed once, DMA'd once,
    # VMEM-resident via constant index_maps).
    eye_s = jnp.eye(S, dtype=x.dtype)
    w_blk = jnp.kron(eye_s, weight.reshape(F, 1).astype(x.dtype))      # (SF, S)
    e_mat = jnp.kron(eye_s, jnp.ones((1, F), dtype=x.dtype))           # (S, SF)
    p_mat = jnp.kron(jnp.ones((S, 1), dtype=x.dtype),
                     jnp.eye(F, dtype=x.dtype))                        # (SF, F)
    b_row = bias.reshape(1, S).astype(x.dtype)

    # Batch tile. Must be a multiple of 8 unless it covers all of B.
    TB = min(tile_b, B)
    if TB < B and TB % 8:
        TB = max(8, (TB // 8) * 8)
    # v7x megacore: make sure the 'parallel' axis has >= 2 blocks when B allows
    # it, so both TensorCores get work (no effect on v5e/v6e).
    if B >= 16 and TB >= B:
        TB = ((B + 1) // 2 + 7) // 8 * 8
    n_blocks = pl.cdiv(B, TB)
    # No jnp.pad: ragged last block is handled by Pallas partial blocks; each
    # batch row is independent, so garbage in padded rows stays isolated and
    # out-of-bounds writes are masked.

    out = pl.pallas_call(
        attention_kernel,
        out_shape=jax.ShapeDtypeStruct((B, F), x.dtype),
        grid=(n_blocks,),
        in_specs=[
            pl.BlockSpec((TB, SF), lambda i: (i, 0)),    # x rows (lane-dense)
            pl.BlockSpec((SF, S), lambda i: (0, 0)),     # W_blk (shared)
            pl.BlockSpec((1, S), lambda i: (0, 0)),      # bias row (shared)
            pl.BlockSpec((S, SF), lambda i: (0, 0)),     # E (shared)
            pl.BlockSpec((SF, F), lambda i: (0, 0)),     # P (shared)
        ],
        out_specs=pl.BlockSpec((TB, F), lambda i: (i, 0)),
        compiler_params=pltpu.CompilerParams(
            dimension_semantics=("parallel",)),
    )(x2d, w_blk, b_row, e_mat, p_mat)
    return out


def attention_reference(x, weight, bias):
    """Exact f32 reference mirroring the PyTorch forward (no bf16 matmul)."""
    B, S, F = x.shape
    eij = jnp.sum(x * weight.reshape(1, 1, F), axis=-1) + bias
    eij = jnp.tanh(eij)
    a = jnp.exp(eij)
    a = a / jnp.sum(a, axis=1, keepdims=True) + 1e-10
    return jnp.sum(x * a[..., None], axis=1)


if __name__ == "__main__":
    # Small shapes implied by the module: step_dim=8, feature_dim=32, batch=2.
    batch, step_dim, feature_dim = 2, 8, 32

    key = jax.random.PRNGKey(0)
    k_x, k_w, k_x2, k_b2 = jax.random.split(key, 4)

    # Deterministic init mimicking nn.init.xavier_uniform_ on (feature_dim, 1).
    bound = math.sqrt(6.0 / (feature_dim + 1))
    weight = jax.random.uniform(
        k_w, (feature_dim, 1), dtype=jnp.float32, minval=-bound, maxval=bound)
    bias = jnp.zeros((step_dim,), dtype=jnp.float32)   # module inits b to zeros

    x = jax.random.normal(k_x, (batch, step_dim, feature_dim), dtype=jnp.float32)

    out = jax.block_until_ready(attention_forward(x, weight, bias))
    ref = attention_reference(x, weight, bias)
    assert out.shape == (batch, feature_dim)
    # Tolerance leaves headroom for MXU f32 matmuls that may be evaluated with
    # bf16 passes depending on backend / precision policy; a semantic bug would
    # be off by O(0.1 - 1).
    assert jnp.allclose(out, ref, atol=2e-2, rtol=2e-2), "mismatch vs reference"

    # Multi-block + ragged-tail path (B=20, TB=16 -> 2 blocks, partial last).
    batch2 = 20
    x2 = jax.random.normal(
        k_x2, (batch2, step_dim, feature_dim), dtype=jnp.float32)
    bias2 = 0.1 * jax.random.normal(k_b2, (step_dim,), dtype=jnp.float32)
    out2 = jax.block_until_ready(attention_forward(x2, weight, bias2, tile_b=16))
    ref2 = attention_reference(x2, weight, bias2)
    assert out2.shape == (batch2, feature_dim)
    assert jnp.allclose(out2, ref2, atol=2e-2, rtol=2e-2), "mismatch (tiled path)"

    print("KERNEL_OK")
</pallas_src>

<mosaic_0001>
module attributes {stable_mosaic.version = 11 : i64} {
  func.func @attention_kernel(%arg0: i32, %arg1: memref<2x256xf32, #tpu.memory_space<vmem>>, %arg2: memref<256x8xf32, #tpu.memory_space<vmem>>, %arg3: memref<1x8xf32, #tpu.memory_space<vmem>>, %arg4: memref<8x256xf32, #tpu.memory_space<vmem>>, %arg5: memref<256x32xf32, #tpu.memory_space<vmem>>, %arg6: memref<2x32xf32, #tpu.memory_space<vmem>>) attributes {dimension_semantics = [#tpu.dimension_semantics<parallel>], iteration_bounds = array<i64: 1>, scalar_prefetch = 0 : i64, scratch_operands = 0 : i64, tpu.core_type = #tpu.core_type<tc>, window_params = [{transform_indices = @transform_0, window_bounds = array<i64: 2, 256>}, {pipeline_mode = #tpu.pipeline_mode<synchronous>, transform_indices = @transform_1, window_bounds = array<i64: 256, 8>}, {pipeline_mode = #tpu.pipeline_mode<synchronous>, transform_indices = @transform_2, window_bounds = array<i64: 1, 8>}, {pipeline_mode = #tpu.pipeline_mode<synchronous>, transform_indices = @transform_3, window_bounds = array<i64: 8, 256>}, {pipeline_mode = #tpu.pipeline_mode<synchronous>, transform_indices = @transform_4, window_bounds = array<i64: 256, 32>}, {transform_indices = @transform_5, window_bounds = array<i64: 2, 32>}]} {
    %c0 = arith.constant 0 : index
    %c0_0 = arith.constant 0 : index
    %0 = vector.load %arg1[%c0, %c0_0] : memref<2x256xf32, #tpu.memory_space<vmem>>, vector<2x256xf32>
    %c0_1 = arith.constant 0 : index
    %c0_2 = arith.constant 0 : index
    %1 = vector.load %arg2[%c0_1, %c0_2] : memref<256x8xf32, #tpu.memory_space<vmem>>, vector<256x8xf32>
    %cst = arith.constant dense<0.000000e+00> : vector<2x8xf32>
    %2 = tpu.matmul %0, %1, %cst {dimension_numbers = #tpu.dot_dimension_numbers<[1], [0], [0], [1], [0, 0, 1, 1], [], []>} : vector<2x256xf32>, vector<256x8xf32>, vector<2x8xf32> -> vector<2x8xf32>
    %c0_3 = arith.constant 0 : index
    %c0_4 = arith.constant 0 : index
    %3 = vector.load %arg3[%c0_3, %c0_4] : memref<1x8xf32, #tpu.memory_space<vmem>>, vector<1x8xf32>
    %4 = vector.broadcast %3 : vector<1x8xf32> to vector<2x8xf32>
    %5 = arith.addf %2, %4 : vector<2x8xf32>
    %6 = math.tanh %5 : vector<2x8xf32>
    %7 = math.exp %6 : vector<2x8xf32>
    %cst_5 = arith.constant dense<0.000000e+00> : vector<2xf32>
    %8 = vector.multi_reduction <add>, %7, %cst_5 [1] : vector<2x8xf32> to vector<2xf32>
    %9 = vector.shape_cast %8 : vector<2xf32> to vector<2x1xf32>
    %10 = vector.broadcast %9 : vector<2x1xf32> to vector<2x8xf32>
    %11 = arith.divf %7, %10 : vector<2x8xf32>
    %cst_6 = arith.constant 1.000000e-10 : f32
    %12 = vector.broadcast %cst_6 : f32 to vector<2x8xf32>
    %13 = arith.addf %11, %12 : vector<2x8xf32>
    %c0_7 = arith.constant 0 : index
    %c0_8 = arith.constant 0 : index
    %14 = vector.load %arg4[%c0_7, %c0_8] : memref<8x256xf32, #tpu.memory_space<vmem>>, vector<8x256xf32>
    %cst_9 = arith.constant dense<0.000000e+00> : vector<2x256xf32>
    %15 = tpu.matmul %13, %14, %cst_9 {dimension_numbers = #tpu.dot_dimension_numbers<[1], [0], [0], [1], [0, 0, 1, 1], [], []>} : vector<2x8xf32>, vector<8x256xf32>, vector<2x256xf32> -> vector<2x256xf32>
    %16 = arith.mulf %0, %15 : vector<2x256xf32>
    %c0_10 = arith.constant 0 : index
    %c0_11 = arith.constant 0 : index
    %17 = vector.load %arg5[%c0_10, %c0_11] : memref<256x32xf32, #tpu.memory_space<vmem>>, vector<256x32xf32>
    %cst_12 = arith.constant dense<0.000000e+00> : vector<2x32xf32>
    %18 = tpu.matmul %16, %17, %cst_12 {dimension_numbers = #tpu.dot_dimension_numbers<[1], [0], [0], [1], [0, 0, 1, 1], [], []>} : vector<2x256xf32>, vector<256x32xf32>, vector<2x32xf32> -> vector<2x32xf32>
    %c0_13 = arith.constant 0 : index
    %c0_14 = arith.constant 0 : index
    %19 = vector.load %arg6[%c0_13, %c0_14] : memref<2x32xf32, #tpu.memory_space<vmem>>, vector<2x32xf32>
    tpu.vector_store %arg6[%c0_13, %c0_14], %18 {strides = array<i32>} : memref<2x32xf32, #tpu.memory_space<vmem>>, vector<2x32xf32>,
    return
  }
  func.func @transform_0(%arg0: i32) -> (i32, i32) {
    %c0_i32 = arith.constant 0 : i32
    %c0_i32_0 = arith.constant 0 : i32
    return %arg0, %c0_i32 : i32, i32
  }
  func.func @transform_1(%arg0: i32) -> (i32, i32) {
    %c0_i32 = arith.constant 0 : i32
    %c0_i32_0 = arith.constant 0 : i32
    %c0_i32_1 = arith.constant 0 : i32
    return %c0_i32, %c0_i32_0 : i32, i32
  }
  func.func @transform_2(%arg0: i32) -> (i32, i32) {
    %c0_i32 = arith.constant 0 : i32
    %c0_i32_0 = arith.constant 0 : i32
    %c0_i32_1 = arith.constant 0 : i32
    return %c0_i32, %c0_i32_0 : i32, i32
  }
  func.func @transform_3(%arg0: i32) -> (i32, i32) {
    %c0_i32 = arith.constant 0 : i32
    %c0_i32_0 = arith.constant 0 : i32
    %c0_i32_1 = arith.constant 0 : i32
    return %c0_i32, %c0_i32_0 : i32, i32
  }
  func.func @transform_4(%arg0: i32) -> (i32, i32) {
    %c0_i32 = arith.constant 0 : i32
    %c0_i32_0 = arith.constant 0 : i32
    %c0_i32_1 = arith.constant 0 : i32
    return %c0_i32, %c0_i32_0 : i32, i32
  }
  func.func @transform_5(%arg0: i32) -> (i32, i32) {
    %c0_i32 = arith.constant 0 : i32
    %c0_i32_0 = arith.constant 0 : i32
    return %arg0, %c0_i32 : i32, i32
  }
}

</mosaic_0001>

<llo_original>
// kernel: tpu_custom_call.1
$region0: #{tpu_custom_call.1}
  #allocation0 [shape = 'u32[]', space=smem, size = 0x4, offset = 0x4, fixed_abs, tag = 'smem constant byte address 0x4 - core index']
  #allocation1 [shape = 'u32[72,128]{1,0:T(1,128)}', space=vmem, size = 0x9000, scoped, tag = 'internal scratch']
  %s0 = inlined_call_operand.vmem [shape: f32[2,256], index: 0, kind: input, shape index: {}]
  %s1 = inlined_call_operand.vmem [shape: f32[256,8], index: 1, kind: input, shape index: {}]
  %s2 = inlined_call_operand.vmem [shape: f32[1,8], index: 2, kind: input, shape index: {}]
  %s3 = inlined_call_operand.vmem [shape: f32[8,256], index: 3, kind: input, shape index: {}]
  %s4 = inlined_call_operand.vmem [shape: f32[256,32], index: 4, kind: input, shape index: {}]
  %s5 = inlined_call_operand.hbm [shape: f32[2,32], index: 5, kind: output, shape index: {}]
  %s6 = sld [smem:[#allocation0]]
  $region30: #{tpu_custom_call.1} parent=0
    _
  %s8 = ssub.s32 1, %s6
  %s9 = scalar_select 0, %s8, %s6
  $region1: #{tpu_custom_call.1} parent=0
    #allocation2 [shape = 'u8[1024]{0}', space=vmem, size = 0x400, scoped, tag = 'output window, operand 0, single buffered']
    #allocation3 [shape = 's32[1]{0}', space=sflag, size = 0x4, scoped, tag = 'scoped memory for tpu_custom_call.1']
    %10 = vsyncpa [#allocation3], 0
    // Predicated region
    $region2: #{tpu_custom_call.1} parent=1 // pred_check
      _
    $region3: #{tpu_custom_call.1} parent=1 // pred_check_branch
      %12 = sbr.rel (0) target = $region5
    $region4: #{tpu_custom_call.1} parent=1 // pred_region
      _
    $region5: #{tpu_custom_call.1} parent=1 // pred_fallthru
      _
    // Predicated region
    $region6: #{tpu_custom_call.1} parent=1 // pred_check
      _
    $region7: #{tpu_custom_call.1} parent=1 // pred_check_branch
      %14 = sbr.rel (0) target = $region9
    $region8: #{tpu_custom_call.1} parent=1 // pred_region
      _
    $region9: #{tpu_custom_call.1} parent=1 // pred_fallthru
      _
    // Predicated region
    $region10: #{tpu_custom_call.1} parent=1 // pred_check
      _
    $region11: #{tpu_custom_call.1} parent=1 // pred_check_branch
      %16 = sbr.rel (0) target = $region13
    $region12: #{tpu_custom_call.1} parent=1 // pred_region
      _
    $region13: #{tpu_custom_call.1} parent=1 // pred_fallthru
      _
    // Predicated region
    $region14: #{tpu_custom_call.1} parent=1 // pred_check
      _
    $region15: #{tpu_custom_call.1} parent=1 // pred_check_branch
      %18 = sbr.rel (0) target = $region17
    $region16: #{tpu_custom_call.1} parent=1 // pred_region
      _
    $region17: #{tpu_custom_call.1} parent=1 // pred_fallthru
      _
    // Predicated region
    $region18: #{tpu_custom_call.1} parent=1 // pred_check
      _
    $region19: #{tpu_custom_call.1} parent=1 // pred_check_branch
      %20 = sbr.rel (0) target = $region21
    $region20: #{tpu_custom_call.1} parent=1 // pred_region
      _
    $region21: #{tpu_custom_call.1} parent=1 // pred_fallthru
      _
    %v21 = vld [vmem:[%s0] sm:$0xf]
    %v22 = vld [vmem:[%s1] sm:$0xff]
    %v23 = vld [vmem:[%s1 + $0x8] sm:$0xff]
    %v24 = vld [vmem:[%s1 + $0x10] sm:$0xff]
    %v25 = vld [vmem:[%s1 + $0x18] sm:$0xff]
    %v26 = vld [vmem:[%s1 + $0x20] sm:$0xff]
    %v27 = vld [vmem:[%s1 + $0x28] sm:$0xff]
    %v28 = vld [vmem:[%s1 + $0x30] sm:$0xff]
    %v29 = vld [vmem:[%s1 + $0x38] sm:$0xff]
    %v30 = vld [vmem:[%s1 + $0x40] sm:$0xff]
    %v31 = vld [vmem:[%s1 + $0x48] sm:$0xff]
    %v32 = vld [vmem:[%s1 + $0x50] sm:$0xff]
    %v33 = vld [vmem:[%s1 + $0x58] sm:$0xff]
    %v34 = vld [vmem:[%s1 + $0x60] sm:$0xff]
    %v35 = vld [vmem:[%s1 + $0x68] sm:$0xff]
    %v36 = vld [vmem:[%s1 + $0x70] sm:$0xff]
    %v37 = vld [vmem:[%s1 + $0x78] sm:$0xff]
    %v38 = vld [vmem:[%s1 + $0x80] sm:$0xff]
    %v39 = vld [vmem:[%s1 + $0x88] sm:$0xff]
    %v40 = vld [vmem:[%s1 + $0x90] sm:$0xff]
    %v41 = vld [vmem:[%s1 + $0x98] sm:$0xff]
    %v42 = vld [vmem:[%s1 + $0xa0] sm:$0xff]
    %v43 = vld [vmem:[%s1 + $0xa8] sm:$0xff]
    %v44 = vld [vmem:[%s1 + $0xb0] sm:$0xff]
    %v45 = vld [vmem:[%s1 + $0xb8] sm:$0xff]
    %v46 = vld [vmem:[%s1 + $0xc0] sm:$0xff]
    %v47 = vld [vmem:[%s1 + $0xc8] sm:$0xff]
    %v48 = vld [vmem:[%s1 + $0xd0] sm:$0xff]
    %v49 = vld [vmem:[%s1 + $0xd8] sm:$0xff]
    %v50 = vld [vmem:[%s1 + $0xe0] sm:$0xff]
    %v51 = vld [vmem:[%s1 + $0xe8] sm:$0xff]
    %v52 = vld [vmem:[%s1 + $0xf0] sm:$0xff]
    %v53 = vld [vmem:[%s1 + $0xf8] sm:$0xff]
    %v54 = vld [vmem:[%s2] sm:$0x1]
    %v56 = vperm.slane %v54, 0
    %59 = vst [vmem:[#allocation1] ss:$4 sm:$0xff] %v21
    %v60 = vld.sshfl [vmem:[#allocation1] sm:$0xff pattern:$0x73625140]
    %v61 = vld.sshfl [vmem:[#allocation1 + $0x8] sm:$0xff pattern:$0x73625140]
    %64 = vmatpush.msra.mxu0 %v37
    %65 = vmatpush.msra.mxu0 %v36
    %66 = vmatpush.msra.mxu0 %v35
    %67 = vmatpush.msra.mxu0 %v34
    %68 = vmatpush.msra.mxu0 %v33
    %69 = vmatpush.msra.mxu0 %v32
    %70 = vmatpush.msra.mxu0 %v31
    %71 = vmatpush.msra.mxu0 %v30
    %72 = vmatpush.msra.mxu0 %v29
    %73 = vmatpush.msra.mxu0 %v28
    %74 = vmatpush.msra.mxu0 %v27
    %75 = vmatpush.msra.mxu0 %v26
    %76 = vmatpush.msra.mxu0 %v25
    %77 = vmatpush.msra.mxu0 %v24
    %78 = vmatpush.msra.mxu0 %v23
    %79 = vmatpush.msra.mxu0 %v22
    %80 = vmatmul.f32.gmra.mxu0 %v60
    %v81 = vpop.f32.mrf.mxu0
    %v82 = vadd.f32 %v56, %v81
    %83 = vdwg.mxu0
    %84 = vmatpush.msra.mxu0 %v53
    %85 = vmatpush.msra.mxu0 %v52
    %86 = vmatpush.msra.mxu0 %v51
    %87 = vmatpush.msra.mxu0 %v50
    %88 = vmatpush.msra.mxu0 %v49
    %89 = vmatpush.msra.mxu0 %v48
    %90 = vmatpush.msra.mxu0 %v47
    %91 = vmatpush.msra.mxu0 %v46
    %92 = vmatpush.msra.mxu0 %v45
    %93 = vmatpush.msra.mxu0 %v44
    %94 = vmatpush.msra.mxu0 %v43
    %95 = vmatpush.msra.mxu0 %v42
    %96 = vmatpush.msra.mxu0 %v41
    %97 = vmatpush.msra.mxu0 %v40
    %98 = vmatpush.msra.mxu0 %v39
    %99 = vmatpush.msra.mxu0 %v38
    %100 = vmatmul.f32.gmra.mxu0 %v61
    %v101 = vpop.f32.mrf.mxu0
    %v102 = vadd.f32 %v82, %v101
    %103 = vdwg.mxu0
    %v104 = vtanh.pop %v102
    %v105 = vmul.f32 %v104, 1.442695
    %v106 = vpow.pop %v105
    %vm107 = vcmask 58368
    %v108 = vsel %vm107, %v106, 0.0
    %109 = vadd.xlane.f32.xlu0 %v108
    %v110 = vpop.xlane.xlu0 %109
    %v111 = vrcp.pop %v110
    %v112 = vmul.f32 %v110, %v111
    %v113 = vsub.f32 1.0, %v112
    %v114 = vmul.f32 %v111, %v113
    %v115 = vadd.f32 %v111, %v114
    %vm116 = vweird.f32 %v110
    %vm117 = vweird.f32 %v111
    %vm118 = vmor %vm116, %vm117
    %v119 = vsel %vm118, %v111, %v115
    %v120 = vand.u32 2147483647, %v110
    %vm121 = vcmp.eq.f32.partialorder %v120, 8.507059e+37
    %v122 = vand.u32 %v110, 2147483648
    %v123 = vor.u32 1.1754944e-38, %v122
    %v124 = vsel %vm121, %v123, %v119
    %v125 = vmul.f32 %v106, %v124
    %v126 = vadd.f32 %v125, 1e-10
    %v127 = vld [vmem:[%s3] sm:$0xff]
    %v128 = vld [vmem:[%s3 + $0x8] sm:$0xff]
    %vm129 = vcmask 64512
    %v131 = vsel %vm129, %v126, 0
    %133 = vmatpush.msra.mxu0 0.0
    %134 = vmatpush.msra.mxu0 0.0
    %135 = vmatpush.msra.mxu0 0.0
    %136 = vmatpush.msra.mxu0 0.0
    %137 = vmatpush.msra.mxu0 0.0
    %138 = vmatpush.msra.mxu0 0.0
    %139 = vmatpush.msra.mxu0 0.0
    %140 = vmatpush.msra.mxu0 0.0
    %141 = vmatpush.msra.mxu0 0.0
    %142 = vmatpush.msra.mxu0 0.0
    %143 = vmatpush.msra.mxu0 0.0
    %144 = vmatpush.msra.mxu0 0.0
    %145 = vmatpush.msra.mxu0 0.0
    %146 = vmatpush.msra.mxu0 0.0
    %147 = vmatpush.msra.mxu0 0.0
    %148 = vmatpush.msra.mxu0 %v127
    %149 = vmatmul.f32.gmra.mxu0 %v131
    %v150 = vpop.f32.mrf.mxu0
    %v151 = vadd.f32 0.0, %v150
    %152 = vdwg.mxu0
    %153 = vmatpush.msra.mxu0 0.0
    %154 = vmatpush.msra.mxu0 0.0
    %155 = vmatpush.msra.mxu0 0.0
    %156 = vmatpush.msra.mxu0 0.0
    %157 = vmatpush.msra.mxu0 0.0
    %158 = vmatpush.msra.mxu0 0.0
    %159 = vmatpush.msra.mxu0 0.0
    %160 = vmatpush.msra.mxu0 0.0
    %161 = vmatpush.msra.mxu0 0.0
    %162 = vmatpush.msra.mxu0 0.0
    %163 = vmatpush.msra.mxu0 0.0
    %164 = vmatpush.msra.mxu0 0.0
    %165 = vmatpush.msra.mxu0 0.0
    %166 = vmatpush.msra.mxu0 0.0
    %167 = vmatpush.msra.mxu0 0.0
    %168 = vmatpush.msra.mxu0 %v128
    %169 = vmatmul.f32.gmra.mxu0 %v131
    %v170 = vpop.f32.mrf.mxu0
    %v171 = vadd.f32 0.0, %v170
    %172 = vdwg.mxu0
    %v175 = vrot.slane %v171, 6
    %vm176 = vcmask 1041408
    %v177 = vsel %vm176, %v151, %v175
    %v179 = vmul.f32 %v21, %v177
    %v180 = vld [vmem:[%s4] sm:$0xff]
    %v181 = vld [vmem:[%s4 + $0x8] sm:$0xff]
    %v182 = vld [vmem:[%s4 + $0x10] sm:$0xff]
    %v183 = vld [vmem:[%s4 + $0x18] sm:$0xff]
    %v184 = vld [vmem:[%s4 + $0x20] sm:$0xff]
    %v185 = vld [vmem:[%s4 + $0x28] sm:$0xff]
    %v186 = vld [vmem:[%s4 + $0x30] sm:$0xff]
    %v187 = vld [vmem:[%s4 + $0x38] sm:$0xff]
    %v188 = vld [vmem:[%s4 + $0x40] sm:$0xff]
    %v189 = vld [vmem:[%s4 + $0x48] sm:$0xff]
    %v190 = vld [vmem:[%s4 + $0x50] sm:$0xff]
    %v191 = vld [vmem:[%s4 + $0x58] sm:$0xff]
    %v192 = vld [vmem:[%s4 + $0x60] sm:$0xff]
    %v193 = vld [vmem:[%s4 + $0x68] sm:$0xff]
    %v194 = vld [vmem:[%s4 + $0x70] sm:$0xff]
    %v195 = vld [vmem:[%s4 + $0x78] sm:$0xff]
    %v196 = vld [vmem:[%s4 + $0x80] sm:$0xff]
    %v197 = vld [vmem:[%s4 + $0x88] sm:$0xff]
    %v198 = vld [vmem:[%s4 + $0x90] sm:$0xff]
    %v199 = vld [vmem:[%s4 + $0x98] sm:$0xff]
    %v200 = vld [vmem:[%s4 + $0xa0] sm:$0xff]
    %v201 = vld [vmem:[%s4 + $0xa8] sm:$0xff]
    %v202 = vld [vmem:[%s4 + $0xb0] sm:$0xff]
    %v203 = vld [vmem:[%s4 + $0xb8] sm:$0xff]
    %v204 = vld [vmem:[%s4 + $0xc0] sm:$0xff]
    %v205 = vld [vmem:[%s4 + $0xc8] sm:$0xff]
    %v206 = vld [vmem:[%s4 + $0xd0] sm:$0xff]
    %v207 = vld [vmem:[%s4 + $0xd8] sm:$0xff]
    %v208 = vld [vmem:[%s4 + $0xe0] sm:$0xff]
    %v209 = vld [vmem:[%s4 + $0xe8] sm:$0xff]
    %v210 = vld [vmem:[%s4 + $0xf0] sm:$0xff]
    %v211 = vld [vmem:[%s4 + $0xf8] sm:$0xff]
    %213 = vst [vmem:[#allocation1] ss:$4 sm:$0xff] %v179
    %v214 = vld.sshfl [vmem:[#allocation1] sm:$0xff pattern:$0x73625140]
    %v215 = vld.sshfl [vmem:[#allocation1 + $0x8] sm:$0xff pattern:$0x73625140]
    %218 = vmatpush.msra.mxu0 %v195
    %219 = vmatpush.msra.mxu0 %v194
    %220 = vmatpush.msra.mxu0 %v193
    %221 = vmatpush.msra.mxu0 %v192
    %222 = vmatpush.msra.mxu0 %v191
    %223 = vmatpush.msra.mxu0 %v190
    %224 = vmatpush.msra.mxu0 %v189
    %225 = vmatpush.msra.mxu0 %v188
    %226 = vmatpush.msra.mxu0 %v187
    %227 = vmatpush.msra.mxu0 %v186
    %228 = vmatpush.msra.mxu0 %v185
    %229 = vmatpush.msra.mxu0 %v184
    %230 = vmatpush.msra.mxu0 %v183
    %231 = vmatpush.msra.mxu0 %v182
    %232 = vmatpush.msra.mxu0 %v181
    %233 = vmatpush.msra.mxu0 %v180
    %234 = vmatmul.f32.gmra.mxu0 %v214
    %v235 = vpop.f32.mrf.mxu0
    %v236 = vadd.f32 0.0, %v235
    %237 = vdwg.mxu0
    %238 = vmatpush.msra.mxu0 %v211
    %239 = vmatpush.msra.mxu0 %v210
    %240 = vmatpush.msra.mxu0 %v209
    %241 = vmatpush.msra.mxu0 %v208
    %242 = vmatpush.msra.mxu0 %v207
    %243 = vmatpush.msra.mxu0 %v206
    %244 = vmatpush.msra.mxu0 %v205
    %245 = vmatpush.msra.mxu0 %v204
    %246 = vmatpush.msra.mxu0 %v203
    %247 = vmatpush.msra.mxu0 %v202
    %248 = vmatpush.msra.mxu0 %v201
    %249 = vmatpush.msra.mxu0 %v200
    %250 = vmatpush.msra.mxu0 %v199
    %251 = vmatpush.msra.mxu0 %v198
    %252 = vmatpush.msra.mxu0 %v197
    %253 = vmatpush.msra.mxu0 %v196
    %254 = vmatmul.f32.gmra.mxu0 %v215
    %v255 = vpop.f32.mrf.mxu0
    %v256 = vadd.f32 %v236, %v255
    %257 = vdwg.mxu0
    %vm258 = vcmask 254976
    %259 = vst.msk [vmem:[#allocation2] sm:$0x3] %vm258, %v256
    // Predicated region
    $region22: #{tpu_custom_call.1} parent=1 // pred_check
      _
    $region23: #{tpu_custom_call.1} parent=1 // pred_check_branch
      %261 = sbr.rel (0) target = $region25
    $region24: #{tpu_custom_call.1} parent=1 // pred_region
      %263 = vsyncadd [#allocation3], 0
      %s265 = sshll.u32 [#allocation2], 4
      %s266 = int_to_ptr.vmem [resolvable:$true] %s265
      %s267 = sshll.u32 %s5, 4
      %s268 = int_to_ptr.hbm [resolvable:$true] %s267
      %270 = dma.vmem_to_hbm [thread:$0]  %s266, 32, %s268, [#allocation3]
    $region25: #{tpu_custom_call.1} parent=1 // pred_fallthru
      _
    // Predicated region
    $region26: #{tpu_custom_call.1} parent=1 // pred_check
      _
    $region27: #{tpu_custom_call.1} parent=1 // pred_check_branch
      %272 = sbr.rel (0) target = $region29
    $region28: #{tpu_custom_call.1} parent=1 // pred_region
      %274 = dma.done [#allocation3], 32
    $region29: #{tpu_custom_call.1} parent=1 // pred_fallthru
      _
    %275 = vsyncpa [#allocation3], 1

</llo_original>
